<compile_context>
chip_gen: v7x
topology: tpu7x:2x2x1
jax: 0.10.0
libtpu: 0.0.40
codegen_flags: <defaults>
</compile_context>

<pallas_src>
import functools
import math

import jax
import jax.numpy as jnp
from jax import lax
from jax.experimental import pallas as pl
from jax.experimental.pallas import tpu as pltpu

_SQRT12 = math.sqrt(12.0)


def _hash_uniform_centered(shape, offset):
    """Counter-based uniform in [-0.5, 0.5) (zero mean, var = 1/12).

    Pure jnp integer ops (3-D iota + integer-hash mixing) so it lowers on the
    Mosaic TPU backend and in interpret mode alike; plenty of quality for a
    1e-5-amplitude perturbation whose only purpose is std regularization.
    """
    Bb, T, H = shape
    idx = (lax.broadcasted_iota(jnp.int32, shape, 0) * jnp.int32(T * H)
           + lax.broadcasted_iota(jnp.int32, shape, 1) * jnp.int32(H)
           + lax.broadcasted_iota(jnp.int32, shape, 2))
    x = idx + offset
    for _ in range(2):
        # (x >>_logical 16) == (x >>_arith 16) & 0xFFFF
        x = jnp.bitwise_xor(x, jnp.bitwise_and(jnp.right_shift(x, 16), 0xFFFF))
        x = x * jnp.int32(0x45D9F3B)          # wrapping int32 multiply
    x = jnp.bitwise_xor(x, jnp.bitwise_and(jnp.right_shift(x, 16), 0xFFFF))
    u = jnp.bitwise_and(x, 0x7FFFFF).astype(jnp.float32) * (1.0 / (1 << 23))
    return u - 0.5


def _asp_kernel(seed_ref, x_ref, w_ref, *out_refs, mean_only):
    # seed_ref: (1,) int32 in SMEM (scalar prefetch)
    # x_ref:    (Bb, T, H) current batch block
    # w_ref:    (1, H) attention weights (shared across the grid)
    # out_refs: mean_only -> (avg (Bb,1,H), weighted (Bb,T,H))
    #           else      -> (avg (Bb,1,H), std (Bb,1,H), weighted (Bb,T,H))
    if mean_only:
        avg_ref, weighted_ref = out_refs
    else:
        avg_ref, std_ref, weighted_ref = out_refs

    x = x_ref[...].astype(jnp.float32)                # (Bb, T, H)
    w = w_ref[...].astype(jnp.float32)                # (1, H)
    Bb, T, H = x.shape

    # Attention scores: lane-axis (H) reduction. VPU mul + XLU sum — the
    # kernel is HBM-bound, so the idle MXU buys nothing here.
    scores = jnp.sum(x * w[None, :, :], axis=-1, keepdims=True)  # (Bb, T, 1)
    t = jnp.tanh(scores)

    # Softmax over T. denom is tiny -> exact division (no approx reciprocal).
    m = jnp.max(t, axis=1, keepdims=True)
    e = jnp.exp(t - m)
    denom = jnp.sum(e, axis=1, keepdims=True)
    attn = e / denom                                  # (Bb, T, 1)

    weighted = x * attn                               # (Bb, T, H)
    weighted_ref[...] = weighted.astype(weighted_ref.dtype)

    avg = jnp.sum(weighted, axis=1, keepdims=True)    # (Bb, 1, H)
    avg_ref[...] = avg.astype(avg_ref.dtype)

    if not mean_only:
        # In-kernel noise (no HBM stream). Counters are globally unique across
        # grid steps; seed offsets the whole stream.
        base = seed_ref[0] + pl.program_id(0) * jnp.int32(Bb * T * H)
        noise = (1e-5 * _SQRT12) * _hash_uniform_centered((Bb, T, H), base)

        # Form wn once; `weighted` and `noise` die here, so only one
        # slab-sized temporary stays live through the variance pass.
        wn = weighted + noise                                     # (Bb, T, H)
        mean_wn = jnp.sum(wn, axis=1, keepdims=True) * (1.0 / T)  # (Bb, 1, H)
        diff = wn - mean_wn
        var = jnp.sum(diff * diff, axis=1, keepdims=True) * (1.0 / (T - 1))
        std_ref[...] = jnp.sqrt(var).astype(std_ref.dtype)


def _vmem_params():
    """Generation-aware (slab_budget, vmem_limit) pair."""
    try:
        cap = pltpu.get_tpu_info().vmem_capacity_bytes
    except Exception:
        cap = 64 << 20                       # conservative (v7x-sized) default
    slab_budget = max(cap // 8, 4 << 20)     # ~8 MiB on v7x, ~16 MiB on v5e/v6e
    vmem_limit = int(min(cap // 2, 64 << 20))  # 32 MiB on v7x, 64 MiB on v5e/v6e
    return slab_budget, vmem_limit


def _choose_b_blk(B, T, H, *, mean_only, vmem_budget_bytes):
    """Largest divisor of B whose peak per-step working set fits the budget,
    preferring >= 4 grid steps while the per-step block stays >= 512 KiB."""
    # Peak f32 slabs of shape (1, T, H) per batch element:
    #   x-in double buffer (2) + weighted-out double buffer (2) + live weighted
    #   value, plus wn/diff temporaries on the std path.
    slabs = 5 if mean_only else 8
    bytes_per_b = slabs * T * H * 4
    divisors = [d for d in range(1, B + 1) if B % d == 0]
    fitting = [d for d in divisors if d * bytes_per_b <= vmem_budget_bytes] or [1]
    b_blk = max(fitting)

    min_block_bytes = 512 << 10
    candidates = [d for d in fitting
                  if d * bytes_per_b >= min_block_bytes and B // d >= 4]
    if candidates:
        b_blk = max(candidates)   # most work per step that still gives >=4 steps
    # TODO(synk): tile T (two-pass / online-softmax with running moment
    # accumulators) for B=1 / very long T where even b_blk=1 overflows VMEM.
    return b_blk


def attentive_statistics_pooling(inputs, att_weights, *, mean_only=False,
                                 seed=0, weighted_dtype=None):
    """inputs: (B, T, H); att_weights: (1, H).
    Returns (representations, weighted):
      representations = concat([avg, std], 1) of shape (B, 2H)
      (or just avg of shape (B, H) when mean_only=True).
    Pass weighted_dtype=jnp.bfloat16 to halve the dominant HBM write stream
    if the consumer of `weighted` tolerates it (default keeps input dtype)."""
    B, T, H = inputs.shape
    weighted_dtype = weighted_dtype or inputs.dtype

    slab_budget, vmem_limit = _vmem_params()
    b_blk = _choose_b_blk(B, T, H, mean_only=mean_only,
                          vmem_budget_bytes=slab_budget)
    grid = (B // b_blk,)

    kernel = functools.partial(_asp_kernel, mean_only=mean_only)

    x_spec = pl.BlockSpec((b_blk, T, H), lambda b, seed_ref: (b, 0, 0))
    w_spec = pl.BlockSpec((1, H), lambda b, seed_ref: (0, 0))
    wout_spec = pl.BlockSpec((b_blk, T, H), lambda b, seed_ref: (b, 0, 0))
    # (B, 1, H) stat outputs: constrained (last two) block dims are (1, H),
    # both full extents, so any divisor b_blk is layout-legal.
    stat_spec = pl.BlockSpec((b_blk, 1, H), lambda b, seed_ref: (b, 0, 0))

    if mean_only:
        out_specs = [stat_spec, wout_spec]
        out_shape = (
            jax.ShapeDtypeStruct((B, 1, H), jnp.float32),
            jax.ShapeDtypeStruct((B, T, H), weighted_dtype),
        )
    else:
        out_specs = [stat_spec, stat_spec, wout_spec]
        out_shape = (
            jax.ShapeDtypeStruct((B, 1, H), jnp.float32),
            jax.ShapeDtypeStruct((B, 1, H), jnp.float32),
            jax.ShapeDtypeStruct((B, T, H), weighted_dtype),
        )

    grid_spec = pltpu.PrefetchScalarGridSpec(
        num_scalar_prefetch=1,
        grid=grid,
        in_specs=[x_spec, w_spec],
        out_specs=out_specs,
    )

    seed_arr = jnp.asarray([seed], dtype=jnp.int32)

    outs = pl.pallas_call(
        kernel,
        out_shape=out_shape,
        grid_spec=grid_spec,
        compiler_params=pltpu.CompilerParams(
            dimension_semantics=("parallel",),
            vmem_limit_bytes=vmem_limit,
        ),
    )(seed_arr, inputs, att_weights)

    if mean_only:
        avg, weighted = outs
        return avg[:, 0, :], weighted

    avg, std, weighted = outs
    reps = jnp.concatenate([avg[:, 0, :], std[:, 0, :]], axis=1)  # tiny (B,2H) op
    return reps, weighted


def init_att_weights(key, hidden_size):
    # kaiming_uniform_ on (1, hidden_size): fan_in = hidden_size,
    # bound = sqrt(6 / fan_in)
    bound = math.sqrt(6.0 / hidden_size)
    return jax.random.uniform(key, (1, hidden_size), jnp.float32,
                              minval=-bound, maxval=bound)


if __name__ == "__main__":
    B, T, H = 2, 8, 32

    key = jax.random.PRNGKey(0)
    k_x, k_w = jax.random.split(key)

    x = jax.random.normal(k_x, (B, T, H), jnp.float32)
    att_w = init_att_weights(k_w, H)

    reps, weighted = attentive_statistics_pooling(x, att_w, mean_only=False,
                                                  seed=1234)
    avg_only, weighted_mo = attentive_statistics_pooling(x, att_w,
                                                         mean_only=True,
                                                         seed=1234)
    jax.block_until_ready((reps, weighted, avg_only, weighted_mo))

    # Pure-JAX reference. The 1e-5 noise is generated in-kernel, so the std
    # reference is noise-free; its effect on std is O(1e-5) -> relaxed atol.
    scores = jnp.einsum("bth,oh->bto", x, att_w)              # (B, T, 1)
    attn = jax.nn.softmax(jnp.tanh(scores[..., 0]), axis=1)   # (B, T)
    w_ref = x * attn[..., None]
    avg_ref = w_ref.sum(1)
    std_ref = jnp.sqrt(((w_ref - w_ref.mean(1, keepdims=True)) ** 2).sum(1)
                       / (T - 1))
    rep_ref = jnp.concatenate([avg_ref, std_ref], axis=1)

    assert jnp.allclose(weighted, w_ref, rtol=1e-3, atol=1e-4), \
        "weighted mismatch"
    assert jnp.allclose(reps, rep_ref, rtol=1e-3, atol=1e-3), \
        "representations mismatch"
    assert jnp.allclose(avg_only, avg_ref, rtol=1e-3, atol=1e-4), \
        "mean_only avg mismatch"
    assert jnp.allclose(weighted_mo, w_ref, rtol=1e-3, atol=1e-4), \
        "mean_only weighted mismatch"

    print("KERNEL_OK")
</pallas_src>

<mosaic_0001>
module attributes {stable_mosaic.version = 11 : i64} {
  func.func @_asp_kernel(%arg0: i32, %arg1: memref<1xi32, #tpu.memory_space<smem>>, %arg2: memref<2x8x32xf32, #tpu.memory_space<vmem>>, %arg3: memref<1x32xf32, #tpu.memory_space<vmem>>, %arg4: memref<2x1x32xf32, #tpu.memory_space<vmem>>, %arg5: memref<2x1x32xf32, #tpu.memory_space<vmem>>, %arg6: memref<2x8x32xf32, #tpu.memory_space<vmem>>) attributes {dimension_semantics = [#tpu.dimension_semantics<parallel>], iteration_bounds = array<i64: 1>, scalar_prefetch = 1 : i64, scratch_operands = 0 : i64, tpu.core_type = #tpu.core_type<tc>, window_params = [{transform_indices = @transform_0, window_bounds = array<i64: 2, 8, 32>}, {pipeline_mode = #tpu.pipeline_mode<synchronous>, transform_indices = @transform_1, window_bounds = array<i64: 1, 32>}, {transform_indices = @transform_2, window_bounds = array<i64: 2, 1, 32>}, {transform_indices = @transform_3, window_bounds = array<i64: 2, 1, 32>}, {transform_indices = @transform_4, window_bounds = array<i64: 2, 8, 32>}]} {
    %c0 = arith.constant 0 : index
    %c0_0 = arith.constant 0 : index
    %c0_1 = arith.constant 0 : index
    %0 = vector.load %arg2[%c0, %c0_0, %c0_1] : memref<2x8x32xf32, #tpu.memory_space<vmem>>, vector<2x8x32xf32>
    %c0_2 = arith.constant 0 : index
    %c0_3 = arith.constant 0 : index
    %1 = vector.load %arg3[%c0_2, %c0_3] : memref<1x32xf32, #tpu.memory_space<vmem>>, vector<1x32xf32>
    %2 = vector.shape_cast %1 : vector<1x32xf32> to vector<1x1x32xf32>
    %3 = vector.broadcast %2 : vector<1x1x32xf32> to vector<2x8x32xf32>
    %4 = arith.mulf %0, %3 : vector<2x8x32xf32>
    %cst = arith.constant dense<0.000000e+00> : vector<2x8xf32>
    %5 = vector.multi_reduction <add>, %4, %cst [2] : vector<2x8x32xf32> to vector<2x8xf32>
    %6 = vector.shape_cast %5 : vector<2x8xf32> to vector<2x8x1xf32>
    %7 = math.tanh %6 : vector<2x8x1xf32>
    %cst_4 = arith.constant dense<0xFF800000> : vector<2x1xf32>
    %8 = vector.multi_reduction <maximumf>, %7, %cst_4 [1] : vector<2x8x1xf32> to vector<2x1xf32>
    %9 = vector.shape_cast %8 : vector<2x1xf32> to vector<2x1x1xf32>
    %10 = vector.broadcast %9 : vector<2x1x1xf32> to vector<2x8x1xf32>
    %11 = arith.subf %7, %10 : vector<2x8x1xf32>
    %12 = math.exp %11 : vector<2x8x1xf32>
    %cst_5 = arith.constant dense<0.000000e+00> : vector<2x1xf32>
    %13 = vector.multi_reduction <add>, %12, %cst_5 [1] : vector<2x8x1xf32> to vector<2x1xf32>
    %14 = vector.shape_cast %13 : vector<2x1xf32> to vector<2x1x1xf32>
    %15 = vector.broadcast %14 : vector<2x1x1xf32> to vector<2x8x1xf32>
    %16 = arith.divf %12, %15 : vector<2x8x1xf32>
    %17 = vector.broadcast %16 : vector<2x8x1xf32> to vector<2x8x32xf32>
    %18 = arith.mulf %0, %17 : vector<2x8x32xf32>
    %c0_6 = arith.constant 0 : index
    %c0_7 = arith.constant 0 : index
    %c0_8 = arith.constant 0 : index
    %19 = vector.load %arg6[%c0_6, %c0_7, %c0_8] : memref<2x8x32xf32, #tpu.memory_space<vmem>>, vector<2x8x32xf32>
    tpu.vector_store %arg6[%c0_6, %c0_7, %c0_8], %18 {strides = array<i32>} : memref<2x8x32xf32, #tpu.memory_space<vmem>>, vector<2x8x32xf32>,
    %cst_9 = arith.constant dense<0.000000e+00> : vector<2x32xf32>
    %20 = vector.multi_reduction <add>, %18, %cst_9 [1] : vector<2x8x32xf32> to vector<2x32xf32>
    %21 = vector.shape_cast %20 : vector<2x32xf32> to vector<2x1x32xf32>
    %c0_10 = arith.constant 0 : index
    %c0_11 = arith.constant 0 : index
    %c0_12 = arith.constant 0 : index
    %22 = vector.load %arg4[%c0_10, %c0_11, %c0_12] : memref<2x1x32xf32, #tpu.memory_space<vmem>>, vector<2x1x32xf32>
    tpu.vector_store %arg4[%c0_10, %c0_11, %c0_12], %21 {strides = array<i32>} : memref<2x1x32xf32, #tpu.memory_space<vmem>>, vector<2x1x32xf32>,
    %c0_13 = arith.constant 0 : index
    %23 = memref.load %arg1[%c0_13] : memref<1xi32, #tpu.memory_space<smem>>
    %c512_i32 = arith.constant 512 : i32
    %24 = arith.muli %arg0, %c512_i32 : i32
    %25 = arith.addi %23, %24 : i32
    %26 = tpu.iota {dimensions = array<i32: 0>} : vector<2x8x32xi32>
    %c256_i32 = arith.constant 256 : i32
    %27 = vector.broadcast %c256_i32 : i32 to vector<2x8x32xi32>
    %28 = arith.muli %26, %27 : vector<2x8x32xi32>
    %29 = tpu.iota {dimensions = array<i32: 1>} : vector<2x8x32xi32>
    %c32_i32 = arith.constant 32 : i32
    %30 = vector.broadcast %c32_i32 : i32 to vector<2x8x32xi32>
    %31 = arith.muli %29, %30 : vector<2x8x32xi32>
    %32 = arith.addi %28, %31 : vector<2x8x32xi32>
    %33 = tpu.iota {dimensions = array<i32: 2>} : vector<2x8x32xi32>
    %34 = arith.addi %32, %33 : vector<2x8x32xi32>
    %35 = vector.broadcast %25 : i32 to vector<2x8x32xi32>
    %36 = arith.addi %34, %35 : vector<2x8x32xi32>
    %c16_i32 = arith.constant 16 : i32
    %37 = vector.broadcast %c16_i32 : i32 to vector<2x8x32xi32>
    %38 = arith.shrsi %36, %37 : vector<2x8x32xi32>
    %c65535_i32 = arith.constant 65535 : i32
    %39 = vector.broadcast %c65535_i32 : i32 to vector<2x8x32xi32>
    %40 = arith.andi %38, %39 : vector<2x8x32xi32>
    %41 = arith.xori %36, %40 : vector<2x8x32xi32>
    %c73244475_i32 = arith.constant 73244475 : i32
    %42 = vector.broadcast %c73244475_i32 : i32 to vector<2x8x32xi32>
    %43 = arith.muli %41, %42 : vector<2x8x32xi32>
    %c16_i32_14 = arith.constant 16 : i32
    %44 = vector.broadcast %c16_i32_14 : i32 to vector<2x8x32xi32>
    %45 = arith.shrsi %43, %44 : vector<2x8x32xi32>
    %c65535_i32_15 = arith.constant 65535 : i32
    %46 = vector.broadcast %c65535_i32_15 : i32 to vector<2x8x32xi32>
    %47 = arith.andi %45, %46 : vector<2x8x32xi32>
    %48 = arith.xori %43, %47 : vector<2x8x32xi32>
    %c73244475_i32_16 = arith.constant 73244475 : i32
    %49 = vector.broadcast %c73244475_i32_16 : i32 to vector<2x8x32xi32>
    %50 = arith.muli %48, %49 : vector<2x8x32xi32>
    %c16_i32_17 = arith.constant 16 : i32
    %51 = vector.broadcast %c16_i32_17 : i32 to vector<2x8x32xi32>
    %52 = arith.shrsi %50, %51 : vector<2x8x32xi32>
    %c65535_i32_18 = arith.constant 65535 : i32
    %53 = vector.broadcast %c65535_i32_18 : i32 to vector<2x8x32xi32>
    %54 = arith.andi %52, %53 : vector<2x8x32xi32>
    %55 = arith.xori %50, %54 : vector<2x8x32xi32>
    %c8388607_i32 = arith.constant 8388607 : i32
    %56 = vector.broadcast %c8388607_i32 : i32 to vector<2x8x32xi32>
    %57 = arith.andi %55, %56 : vector<2x8x32xi32>
    %58 = arith.sitofp %57 : vector<2x8x32xi32> to vector<2x8x32xf32>
    %cst_19 = arith.constant 1.1920929E-7 : f32
    %59 = vector.broadcast %cst_19 : f32 to vector<2x8x32xf32>
    %60 = arith.mulf %58, %59 : vector<2x8x32xf32>
    %cst_20 = arith.constant 5.000000e-01 : f32
    %61 = vector.broadcast %cst_20 : f32 to vector<2x8x32xf32>
    %62 = arith.subf %60, %61 : vector<2x8x32xf32>
    %cst_21 = arith.constant 3.46410161E-5 : f32
    %63 = vector.broadcast %cst_21 : f32 to vector<2x8x32xf32>
    %64 = arith.mulf %63, %62 : vector<2x8x32xf32>
    %65 = arith.addf %18, %64 : vector<2x8x32xf32>
    %cst_22 = arith.constant dense<0.000000e+00> : vector<2x32xf32>
    %66 = vector.multi_reduction <add>, %65, %cst_22 [1] : vector<2x8x32xf32> to vector<2x32xf32>
    %67 = vector.shape_cast %66 : vector<2x32xf32> to vector<2x1x32xf32>
    %cst_23 = arith.constant 1.250000e-01 : f32
    %68 = vector.broadcast %cst_23 : f32 to vector<2x1x32xf32>
    %69 = arith.mulf %67, %68 : vector<2x1x32xf32>
    %70 = vector.broadcast %69 : vector<2x1x32xf32> to vector<2x8x32xf32>
    %71 = arith.subf %65, %70 : vector<2x8x32xf32>
    %72 = arith.mulf %71, %71 : vector<2x8x32xf32>
    %cst_24 = arith.constant dense<0.000000e+00> : vector<2x32xf32>
    %73 = vector.multi_reduction <add>, %72, %cst_24 [1] : vector<2x8x32xf32> to vector<2x32xf32>
    %74 = vector.shape_cast %73 : vector<2x32xf32> to vector<2x1x32xf32>
    %cst_25 = arith.constant 0.142857149 : f32
    %75 = vector.broadcast %cst_25 : f32 to vector<2x1x32xf32>
    %76 = arith.mulf %74, %75 : vector<2x1x32xf32>
    %77 = math.sqrt %76 : vector<2x1x32xf32>
    %c0_26 = arith.constant 0 : index
    %c0_27 = arith.constant 0 : index
    %c0_28 = arith.constant 0 : index
    %78 = vector.load %arg5[%c0_26, %c0_27, %c0_28] : memref<2x1x32xf32, #tpu.memory_space<vmem>>, vector<2x1x32xf32>
    tpu.vector_store %arg5[%c0_26, %c0_27, %c0_28], %77 {strides = array<i32>} : memref<2x1x32xf32, #tpu.memory_space<vmem>>, vector<2x1x32xf32>,
    return
  }
  func.func @transform_0(%arg0: i32, %arg1: memref<1xi32, #tpu.memory_space<smem>>) -> (i32, i32, i32) {
    %c0_i32 = arith.constant 0 : i32
    %c0_i32_0 = arith.constant 0 : i32
    %c0_i32_1 = arith.constant 0 : i32
    return %arg0, %c0_i32, %c0_i32_0 : i32, i32, i32
  }
  func.func @transform_1(%arg0: i32, %arg1: memref<1xi32, #tpu.memory_space<smem>>) -> (i32, i32) {
    %c0_i32 = arith.constant 0 : i32
    %c0_i32_0 = arith.constant 0 : i32
    %c0_i32_1 = arith.constant 0 : i32
    return %c0_i32, %c0_i32_0 : i32, i32
  }
  func.func @transform_2(%arg0: i32, %arg1: memref<1xi32, #tpu.memory_space<smem>>) -> (i32, i32, i32) {
    %c0_i32 = arith.constant 0 : i32
    %c0_i32_0 = arith.constant 0 : i32
    %c0_i32_1 = arith.constant 0 : i32
    return %arg0, %c0_i32, %c0_i32_0 : i32, i32, i32
  }
  func.func @transform_3(%arg0: i32, %arg1: memref<1xi32, #tpu.memory_space<smem>>) -> (i32, i32, i32) {
    %c0_i32 = arith.constant 0 : i32
    %c0_i32_0 = arith.constant 0 : i32
    %c0_i32_1 = arith.constant 0 : i32
    return %arg0, %c0_i32, %c0_i32_0 : i32, i32, i32
  }
  func.func @transform_4(%arg0: i32, %arg1: memref<1xi32, #tpu.memory_space<smem>>) -> (i32, i32, i32) {
    %c0_i32 = arith.constant 0 : i32
    %c0_i32_0 = arith.constant 0 : i32
    %c0_i32_1 = arith.constant 0 : i32
    return %arg0, %c0_i32, %c0_i32_0 : i32, i32, i32
  }
}

</mosaic_0001>

<llo_original>
// kernel: tpu_custom_call.1
$region0: #{tpu_custom_call.1}
  #allocation0 [shape = 'u32[]', space=smem, size = 0x4, offset = 0x4, fixed_abs, tag = 'smem constant byte address 0x4 - core index']
  #allocation1 [shape = 'u32[144,128]{1,0:T(1,128)}', space=vmem, size = 0x12000, scoped, tag = 'internal scratch']
  #allocation2 [shape = 's32[1]{0}', space=sflag, size = 0x4, scoped, tag = 'scoped memory for tpu_custom_call.1']
  #allocation3 [shape = 's32[1]{0:T(128)S(6)}', space=smem, size = 0x200, scoped, tag = 'prefetched SMEM operand 0']
  %s0 = inlined_call_operand.<no memory space> [shape: s32[1], index: 0, kind: input, shape index: {}]
  %s1 = inlined_call_operand.hbm [shape: f32[2,8,32], index: 1, kind: input, shape index: {}]
  %s2 = inlined_call_operand.vmem [shape: f32[1,32], index: 2, kind: input, shape index: {}]
  %s3 = inlined_call_operand.hbm [shape: f32[2,1,32], index: 3, kind: output, shape index: {0}]
  %s4 = inlined_call_operand.hbm [shape: f32[2,1,32], index: 4, kind: output, shape index: {1}]
  %s5 = inlined_call_operand.hbm [shape: f32[2,8,32], index: 5, kind: output, shape index: {2}]
  %6 = xla_tuple %s3, %s4, %s5
  %s7 = sld [smem:[#allocation0]]
  $region38: #{tpu_custom_call.1} parent=0
    _
  %s9 = ssub.s32 1, %s7
  %s10 = scalar_select 0, %s9, %s7
  %11 = sst [smem:[#allocation3]] %s0
  $region1: #{tpu_custom_call.1} parent=0
    #allocation4 [shape = 'u8[8192]{0}', space=vmem, size = 0x2000, scoped, tag = 'input window, operand 1, single buffered']
    #allocation5 [shape = 's32[1]{0}', space=sflag, size = 0x4, scoped, tag = 'scoped memory for tpu_custom_call.1']
    #allocation6 [shape = 's32[1]{0}', space=sflag, size = 0x4, scoped, tag = 'scoped memory for tpu_custom_call.1']
    #allocation7 [shape = 'u8[1024]{0}', space=vmem, size = 0x400, scoped, tag = 'output window, operand 0, single buffered']
    #allocation8 [shape = 'u8[1024]{0}', space=vmem, size = 0x400, scoped, tag = 'output window, operand 1, single buffered']
    #allocation9 [shape = 's32[1]{0}', space=sflag, size = 0x4, scoped, tag = 'scoped memory for tpu_custom_call.1']
    #allocation10 [shape = 'u8[8192]{0}', space=vmem, size = 0x2000, scoped, tag = 'output window, operand 2, single buffered']
    %12 = vsyncpa [#allocation5], 0
    %13 = vsyncpa [#allocation6], 0
    %14 = vsyncpa [#allocation9], 0
    // Predicated region
    $region2: #{tpu_custom_call.1} parent=1 // pred_check
      _
    $region3: #{tpu_custom_call.1} parent=1 // pred_check_branch
      %16 = sbr.rel (0) target = $region5
    $region4: #{tpu_custom_call.1} parent=1 // pred_region
      %s18 = ssub.s32 256, 256
      %19 = vsyncadd [#allocation5], %s18
      %s20 = sshll.u32 [#allocation4], 4
      %s21 = int_to_ptr.vmem [resolvable:$true] %s20
      %26 = dma.hbm_to_vmem [thread:$0]  %s1, 256, %s21, [#allocation5], 128, 128, 8
    $region5: #{tpu_custom_call.1} parent=1 // pred_fallthru
      _
    // Predicated region
    $region6: #{tpu_custom_call.1} parent=1 // pred_check
      _
    $region7: #{tpu_custom_call.1} parent=1 // pred_check_branch
      %28 = sbr.rel (0) target = $region9
    $region8: #{tpu_custom_call.1} parent=1 // pred_region
      _
    $region9: #{tpu_custom_call.1} parent=1 // pred_fallthru
      _
    // Predicated region
    $region10: #{tpu_custom_call.1} parent=1 // pred_check
      _
    $region11: #{tpu_custom_call.1} parent=1 // pred_check_branch
      %30 = sbr.rel (0) target = $region13
    $region12: #{tpu_custom_call.1} parent=1 // pred_region
      %31 = dma.done [#allocation5], 256
    $region13: #{tpu_custom_call.1} parent=1 // pred_fallthru
      _
    %v32 = vld [vmem:[#allocation4] sm:$0xff]
    %v33 = vld [vmem:[#allocation4 + $0x8] sm:$0xff]
    %v34 = vld [vmem:[%s2] sm:$0x1]
    %v36 = vlaneseq
    %v37 = vshrl.u32 %v36, 7
    %v38 = vsub.s32 0, %v37
    %v39 = vrot.slane %v34, %v38
    %v41 = vmul.f32 %v32, %v39
    %v42 = vmul.f32 %v33, %v39
    %vm43 = vcmask 261120
    %v44 = vsel %vm43, %v41, 0.0
    %45 = vadd.xlane.f32.xlu0 %v44
    %v46 = vpop.xlane.xlu0 %45
    %v47 = vsel %vm43, %v42, 0.0
    %48 = vadd.xlane.f32.xlu0 %v47
    %v49 = vpop.xlane.xlu0 %48
    %v50 = vtanh.pop %v46
    %v51 = vtanh.pop %v49
    %v52 = vrot.slane %v50, 4
    %v53 = vmax.f32 %v50, %v52
    %v54 = vrot.slane %v53, 2
    %v55 = vmax.f32 %v53, %v54
    %v56 = vrot.slane %v55, 1
    %v57 = vmax.f32 %v55, %v56
    %v58 = vrot.slane %v51, 4
    %v59 = vmax.f32 %v51, %v58
    %v60 = vrot.slane %v59, 2
    %v61 = vmax.f32 %v59, %v60
    %v62 = vrot.slane %v61, 1
    %v63 = vmax.f32 %v61, %v62
    %v64 = vsub.f32 %v50, %v57
    %v65 = vsub.f32 %v51, %v63
    %v66 = vmul.f32 %v64, 1.442695
    %v67 = vpow.pop %v66
    %v68 = vmul.f32 %v65, 1.442695
    %v69 = vpow.pop %v68
    %v70 = vrot.slane %v67, 4
    %v71 = vadd.f32 %v67, %v70
    %v72 = vrot.slane %v71, 2
    %v73 = vadd.f32 %v71, %v72
    %v74 = vrot.slane %v73, 1
    %v75 = vadd.f32 %v73, %v74
    %v76 = vrot.slane %v69, 4
    %v77 = vadd.f32 %v69, %v76
    %v78 = vrot.slane %v77, 2
    %v79 = vadd.f32 %v77, %v78
    %v80 = vrot.slane %v79, 1
    %v81 = vadd.f32 %v79, %v80
    %v82 = vrcp.pop %v75
    %v83 = vmul.f32 %v67, %v82
    %v84 = vrcp.pop %v81
    %v85 = vmul.f32 %v69, %v84
    %v86 = vmul.f32 %v32, %v83
    %v87 = vmul.f32 %v33, %v85
    %88 = vst.msk [vmem:[#allocation10] sm:$0xff] %vm43, %v86
    %89 = vst.msk [vmem:[#allocation10 + $0x8] sm:$0xff] %vm43, %v87
    %v90 = vsel %vm43, %v86, 0.0
    %v91 = vrot.slane %v90, 4
    %v92 = vadd.f32 %v90, %v91
    %v93 = vrot.slane %v92, 2
    %v94 = vadd.f32 %v92, %v93
    %v95 = vrot.slane %v94, 1
    %v96 = vadd.f32 %v94, %v95
    %v97 = vsel %vm43, %v87, 0.0
    %v98 = vrot.slane %v97, 4
    %v99 = vadd.f32 %v97, %v98
    %v100 = vrot.slane %v99, 2
    %v101 = vadd.f32 %v99, %v100
    %v102 = vrot.slane %v101, 1
    %v103 = vadd.f32 %v101, %v102
    %vm104 = vcmask 253952
    %105 = vst.msk [vmem:[#allocation7] sm:$0x1] %vm104, %v96
    %106 = vst.msk [vmem:[#allocation7 + $0x1] sm:$0x1] %vm104, %v103
    %s107 = sld [smem:[#allocation3]]
    %s108 = smul.u32 0, 512
    %s109 = sadd.s32 %s107, %s108
    %v110 = vlaneseq
    %v111 = vshrl.u32 %v110, 7
    %v112 = vmul.u32 %v111, 32
    %v113 = vadd.s32 %v112, 256
    %v114 = vlaneseq
    %v115 = vand.u32 %v114, 127
    %v116 = vadd.s32 %v112, %v115
    %v117 = vadd.s32 %v113, %v115
    %v118 = vstv %s109
    %v119 = vadd.s32 %v116, %v118
    %v120 = vadd.s32 %v117, %v118
    %v121 = vshra.s32 %v119, 16
    %v122 = vshra.s32 %v120, 16
    %v123 = vand.u32 %v121, 65535
    %v124 = vand.u32 %v122, 65535
    %v125 = vxor.u32 %v119, %v123
    %v126 = vxor.u32 %v120, %v124
    %v127 = vmul.u32 %v125, 73244475
    %v128 = vmul.u32 %v126, 73244475
    %v129 = vshra.s32 %v127, 16
    %v130 = vshra.s32 %v128, 16
    %v131 = vand.u32 %v129, 65535
    %v132 = vand.u32 %v130, 65535
    %v133 = vxor.u32 %v127, %v131
    %v134 = vxor.u32 %v128, %v132
    %v135 = vmul.u32 %v133, 73244475
    %v136 = vmul.u32 %v134, 73244475
    %v137 = vshra.s32 %v135, 16
    %v138 = vshra.s32 %v136, 16
    %v139 = vand.u32 %v137, 65535
    %v140 = vand.u32 %v138, 65535
    %v141 = vxor.u32 %v135, %v139
    %v142 = vxor.u32 %v136, %v140
    %v143 = vand.u32 %v141, 8388607
    %v144 = vand.u32 %v142, 8388607
    %v145 = vcvt.s32.f32 %v143
    %v146 = vcvt.s32.f32 %v144
    %v147 = vmul.f32 %v145, 1.1920929e-07
    %v148 = vmul.f32 %v146, 1.1920929e-07
    %v149 = vsub.f32 %v147, 0.5
    %v150 = vsub.f32 %v148, 0.5
    %v151 = vmul.f32 %v149, 3.4641016e-05
    %v152 = vmul.f32 %v150, 3.4641016e-05
    %v153 = vadd.f32 %v86, %v151
    %v154 = vadd.f32 %v87, %v152
    %v155 = vsel %vm43, %v153, 0.0
    %v156 = vrot.slane %v155, 4
    %v157 = vadd.f32 %v155, %v156
    %v158 = vrot.slane %v157, 2
    %v159 = vadd.f32 %v157, %v158
    %v160 = vrot.slane %v159, 1
    %v161 = vadd.f32 %v159, %v160
    %v162 = vsel %vm43, %v154, 0.0
    %v163 = vrot.slane %v162, 4
    %v164 = vadd.f32 %v162, %v163
    %v165 = vrot.slane %v164, 2
    %v166 = vadd.f32 %v164, %v165
    %v167 = vrot.slane %v166, 1
    %v168 = vadd.f32 %v166, %v167
    %v169 = vmul.f32 %v161, 0.125
    %v170 = vmul.f32 %v168, 0.125
    %v171 = vsub.f32 %v153, %v169
    %v172 = vsub.f32 %v154, %v170
    %v173 = vmul.f32 %v171, %v171
    %v174 = vmul.f32 %v172, %v172
    %v175 = vsel %vm43, %v173, 0.0
    %v176 = vrot.slane %v175, 4
    %v177 = vadd.f32 %v175, %v176
    %v178 = vrot.slane %v177, 2
    %v179 = vadd.f32 %v177, %v178
    %v180 = vrot.slane %v179, 1
    %v181 = vadd.f32 %v179, %v180
    %v182 = vsel %vm43, %v174, 0.0
    %v183 = vrot.slane %v182, 4
    %v184 = vadd.f32 %v182, %v183
    %v185 = vrot.slane %v184, 2
    %v186 = vadd.f32 %v184, %v185
    %v187 = vrot.slane %v186, 1
    %v188 = vadd.f32 %v186, %v187
    %v189 = vmul.f32 %v181, 0.14285715
    %v190 = vmul.f32 %v188, 0.14285715
    %v191 = vrsqrt.pop %v189
    %v192 = vmul.f32 %v189, %v191
    %vm193 = vcmp.eq.f32.partialorder %v189, inf
    %v194 = vsel %vm193, %v189, %v192
    %vm195 = vcmp.eq.f32.partialorder %v189, 0.0
    %v196 = vand.u32 %v189, 2147483648
    %v197 = vsel %vm195, %v196, %v194
    %v198 = vrsqrt.pop %v190
    %v199 = vmul.f32 %v190, %v198
    %vm200 = vcmp.eq.f32.partialorder %v190, inf
    %v201 = vsel %vm200, %v190, %v199
    %vm202 = vcmp.eq.f32.partialorder %v190, 0.0
    %v203 = vand.u32 %v190, 2147483648
    %v204 = vsel %vm202, %v203, %v201
    %205 = vst.msk [vmem:[#allocation8] sm:$0x1] %vm104, %v197
    %206 = vst.msk [vmem:[#allocation8 + $0x1] sm:$0x1] %vm104, %v204
    // Predicated region
    $region14: #{tpu_custom_call.1} parent=1 // pred_check
      _
    $region15: #{tpu_custom_call.1} parent=1 // pred_check_branch
      %208 = sbr.rel (0) target = $region17
    $region16: #{tpu_custom_call.1} parent=1 // pred_region
      %s210 = ssub.s32 32, 32
      %211 = vsyncadd [#allocation6], %s210
      %s212 = sshll.u32 [#allocation7], 4
      %s213 = int_to_ptr.vmem [resolvable:$true] %s212
      %218 = dma.vmem_to_hbm [thread:$0]  %s213, 32, %s3, [#allocation6], 16, 16, 1
    $region17: #{tpu_custom_call.1} parent=1 // pred_fallthru
      _
    // Predicated region
    $region18: #{tpu_custom_call.1} parent=1 // pred_check
      _
    $region19: #{tpu_custom_call.1} parent=1 // pred_check_branch
      %220 = sbr.rel (0) target = $region21
    $region20: #{tpu_custom_call.1} parent=1 // pred_region
      %s222 = ssub.s32 32, 32
      %223 = vsyncadd [#allocation9], %s222
      %s224 = sshll.u32 [#allocation8], 4
      %s225 = int_to_ptr.vmem [resolvable:$true] %s224
      %230 = dma.vmem_to_hbm [thread:$0]  %s225, 32, %s4, [#allocation9], 16, 16, 1
    $region21: #{tpu_custom_call.1} parent=1 // pred_fallthru
      _
    // Predicated region
    $region22: #{tpu_custom_call.1} parent=1 // pred_check
      _
    $region23: #{tpu_custom_call.1} parent=1 // pred_check_branch
      %232 = sbr.rel (0) target = $region25
    $region24: #{tpu_custom_call.1} parent=1 // pred_region
      %s234 = ssub.s32 256, 256
      %235 = vsyncadd [#allocation9], %s234
      %s236 = sshll.u32 [#allocation10], 4
      %s237 = int_to_ptr.vmem [resolvable:$true] %s236
      %242 = dma.vmem_to_hbm [thread:$0]  %s237, 256, %s5, [#allocation9], 128, 128, 8
    $region25: #{tpu_custom_call.1} parent=1 // pred_fallthru
      _
    // Predicated region
    $region26: #{tpu_custom_call.1} parent=1 // pred_check
      _
    $region27: #{tpu_custom_call.1} parent=1 // pred_check_branch
      %244 = sbr.rel (0) target = $region29
    $region28: #{tpu_custom_call.1} parent=1 // pred_region
      %245 = dma.done [#allocation6], 32
    $region29: #{tpu_custom_call.1} parent=1 // pred_fallthru
      _
    // Predicated region
    $region30: #{tpu_custom_call.1} parent=1 // pred_check
      _
    $region31: #{tpu_custom_call.1} parent=1 // pred_check_branch
      %247 = sbr.rel (0) target = $region33
    $region32: #{tpu_custom_call.1} parent=1 // pred_region
      %248 = dma.done [#allocation9], 32
    $region33: #{tpu_custom_call.1} parent=1 // pred_fallthru
      _
    // Predicated region
    $region34: #{tpu_custom_call.1} parent=1 // pred_check
      _
    $region35: #{tpu_custom_call.1} parent=1 // pred_check_branch
      %250 = sbr.rel (0) target = $region37
    $region36: #{tpu_custom_call.1} parent=1 // pred_region
      %251 = dma.done [#allocation9], 256
    $region37: #{tpu_custom_call.1} parent=1 // pred_fallthru
      _
    %252 = vsyncpa [#allocation5], 1
    %253 = vsyncpa [#allocation6], 1
    %254 = vsyncpa [#allocation9], 1

</llo_original>
